<compile_context>
chip_gen: v7x
topology: tpu7x:2x2x1
jax: 0.10.0
libtpu: 0.0.40
codegen_flags: <defaults>
</compile_context>

<pallas_src>
import jax
import jax.numpy as jnp
from jax.experimental import pallas as pl
from jax.experimental.pallas import tpu as pltpu

_LANE = 128
# 2 MiB per block per ref; with double-buffered in+out this is ~8 MiB VMEM.
_MAX_BLOCK_BYTES = 2 * 1024 * 1024


def _round_up(x: int, m: int) -> int:
    return -(-x // m) * m


def _gamma_kernel(params_ref, x_ref, o_ref):
    # params_ref: SMEM f32[2] = [gamma, gain]
    gamma = params_ref[0]
    gain = params_ref[1]
    # Cast per-tile in VMEM; keep transcendental math in f32 (no bf16 EUP on v5e).
    x = x_ref[...].astype(jnp.float32)
    # x ** gamma via exp(gamma * log(x)), guarded for x == 0 (images >= 0,
    # gamma > 0 assumed).  The maximum/where/clip chain rides in otherwise-idle
    # VALU slots -- the kernel is HBM/EUP-bound, so it is free.
    safe = jnp.maximum(x, jnp.float32(1e-30))
    y = jnp.exp(gamma * jnp.log(safe))
    y = jnp.where(x > 0, y, jnp.zeros_like(y))
    y = jnp.clip(gain * y, 0.0, 1.0)
    o_ref[...] = y.astype(o_ref.dtype)


def _choose_tile_rows(rows_min: int, sub: int, max_tile_rows: int) -> int:
    """Pick a row-tile: big blocks for large inputs, >=2 pad-free steps when possible."""
    if rows_min > max_tile_rows:
        # Large input: many steps already; use the biggest block.
        return max_tile_rows
    if rows_min >= 2 * sub and rows_min % (2 * sub) == 0:
        # Split evenly into 2 blocks (no padding) so both v7x TCs get work.
        return rows_min // 2
    # Tiny / odd row count: single step.
    return rows_min


def _adjust_gamma_image(img: jax.Array, params: jax.Array) -> jax.Array:
    """clamp(gain * img**gamma, 0, 1) on one image via a tiled Pallas kernel."""
    dtype = img.dtype
    n = img.size
    itemsize = jnp.dtype(dtype).itemsize
    sub = max(8, 32 // itemsize)              # dtype-aware sublane (8/16/32)
    rows = -(-n // _LANE)                     # ceil(n / 128)
    rows_min = _round_up(rows, sub)
    max_tile_rows = max(sub, (_MAX_BLOCK_BYTES // (_LANE * itemsize)) // sub * sub)
    tile_r = _choose_tile_rows(rows_min, sub, max_tile_rows)
    rows_padded = _round_up(rows_min, tile_r)
    pad = rows_padded * _LANE - n

    flat = img.reshape(-1)
    if pad:
        # Ragged tail only; the divisible case (common) is a zero-copy reshape.
        flat = jnp.pad(flat, (0, pad))
    x2d = flat.reshape(rows_padded, _LANE)

    out2d = pl.pallas_call(
        _gamma_kernel,
        out_shape=jax.ShapeDtypeStruct((rows_padded, _LANE), dtype),
        grid=(rows_padded // tile_r,),
        in_specs=[
            pl.BlockSpec(memory_space=pltpu.MemorySpace.SMEM),   # [gamma, gain]
            pl.BlockSpec((tile_r, _LANE), lambda i: (i, 0)),     # image tile
        ],
        out_specs=pl.BlockSpec((tile_r, _LANE), lambda i: (i, 0)),
        compiler_params=pltpu.CompilerParams(
            dimension_semantics=("parallel",),
        ),
        cost_estimate=pl.CostEstimate(
            flops=5 * n,
            transcendentals=2 * n,
            bytes_accessed=2 * n * itemsize,
        ),
    )(params, x2d)

    out = out2d.reshape(-1)
    if pad:
        out = out[:n]
    return out.reshape(img.shape)


@jax.jit
def _adjust_gamma_pair(left: jax.Array, right: jax.Array, gamma, gain):
    """Gamma-adjust both stereo images (two lane-dense pallas_calls, no concat)."""
    params = jnp.stack(
        [jnp.asarray(gamma, jnp.float32), jnp.asarray(gain, jnp.float32)]
    )
    out_left = _adjust_gamma_image(left, params)
    out_right = _adjust_gamma_image(right, params)
    return out_left, out_right


class AsymetricGammaAdjustPallas:
    """JAX/Pallas port of AsymetricGammaAdjust."""

    def __init__(self, p: float, gamma_range, gain: float = 1.0):
        self.p = p
        self.gamma_range = gamma_range
        self.gain = gain

    def __call__(self, key, images, disparities, masks):
        k_gamma, k_p = jax.random.split(key)
        low, high = self.gamma_range
        # rand_float_range: (low - high) * U[0,1) + high  == uniform in (low, high]
        gamma = (low - high) * jax.random.uniform(k_gamma, ()) + high
        # Both branches of the p-coin-flip in the reference use the SAME gamma
        # and are elementwise-identical, so the flip does not change the output.
        _ = jax.random.uniform(k_p, ()) < self.p

        img_left, img_right = _adjust_gamma_pair(
            images[0], images[1], gamma, jnp.float32(self.gain)
        )
        return (img_left, img_right), disparities, masks


if __name__ == "__main__":
    key = jax.random.PRNGKey(0)
    k_img_l, k_img_r, k_disp, k_fwd = jax.random.split(key, 4)

    N, C, H, W = 2, 4, 16, 16          # NCHW, small stereo batch
    img_left = jax.random.uniform(k_img_l, (N, C, H, W), dtype=jnp.float32)
    img_right = jax.random.uniform(k_img_r, (N, C, H, W), dtype=jnp.float32)
    disparities = (
        jax.random.normal(k_disp, (N, 1, H, W), dtype=jnp.float32),
        None,
    )
    masks = (jnp.ones((N, 1, H, W), dtype=jnp.float32), None)

    module = AsymetricGammaAdjustPallas(p=0.5, gamma_range=(0.8, 1.2), gain=1.0)
    (out_l, out_r), out_disp, out_masks = module(
        k_fwd, (img_left, img_right), disparities, masks
    )
    jax.block_until_ready(out_l)
    jax.block_until_ready(out_r)

    # sanity: disparities / masks pass through untouched, images stay in [0, 1]
    assert out_l.shape == img_left.shape and out_r.shape == img_right.shape
    assert out_l.dtype == img_left.dtype and out_r.dtype == img_right.dtype
    assert out_disp is disparities and out_masks is masks
    assert bool(jnp.all((out_l >= 0.0) & (out_l <= 1.0)))
    assert bool(jnp.all((out_r >= 0.0) & (out_r <= 1.0)))

    print("KERNEL_OK")
</pallas_src>

<mosaic_0001>
module attributes {stable_mosaic.version = 11 : i64} {
  func.func @_gamma_kernel(%arg0: i32, %arg1: memref<2xf32, #tpu.memory_space<smem>>, %arg2: memref<8x128xf32, #tpu.memory_space<vmem>>, %arg3: memref<8x128xf32, #tpu.memory_space<vmem>>) attributes {dimension_semantics = [#tpu.dimension_semantics<parallel>], iteration_bounds = array<i64: 2>, scalar_prefetch = 0 : i64, scratch_operands = 0 : i64, tpu.core_type = #tpu.core_type<tc>, window_params = [{transform_indices = @transform_0, window_bounds = array<i64: 2>}, {transform_indices = @transform_1, window_bounds = array<i64: 8, 128>}, {transform_indices = @transform_2, window_bounds = array<i64: 8, 128>}]} {
    %c0 = arith.constant 0 : index
    %0 = memref.load %arg1[%c0] : memref<2xf32, #tpu.memory_space<smem>>
    %c1 = arith.constant 1 : index
    %1 = memref.load %arg1[%c1] : memref<2xf32, #tpu.memory_space<smem>>
    %c0_0 = arith.constant 0 : index
    %c0_1 = arith.constant 0 : index
    %2 = vector.load %arg2[%c0_0, %c0_1] : memref<8x128xf32, #tpu.memory_space<vmem>>, vector<8x128xf32>
    %cst = arith.constant 1.000000e-30 : f32
    %3 = vector.broadcast %cst : f32 to vector<8x128xf32>
    %4 = arith.maximumf %2, %3 : vector<8x128xf32>
    %5 = math.log %4 : vector<8x128xf32>
    %6 = vector.broadcast %0 : f32 to vector<8x128xf32>
    %7 = arith.mulf %6, %5 : vector<8x128xf32>
    %8 = math.exp %7 : vector<8x128xf32>
    %cst_2 = arith.constant 0.000000e+00 : f32
    %9 = vector.broadcast %cst_2 : f32 to vector<8x128xf32>
    %10 = arith.cmpf ogt, %2, %9 : vector<8x128xf32>
    %cst_3 = arith.constant 0.000000e+00 : f32
    %11 = vector.broadcast %cst_3 : f32 to vector<8x128xf32>
    %12 = arith.select %10, %8, %11 : vector<8x128xi1>, vector<8x128xf32>
    %13 = vector.broadcast %1 : f32 to vector<8x128xf32>
    %14 = arith.mulf %13, %12 : vector<8x128xf32>
    %cst_4 = arith.constant 0.000000e+00 : f32
    %cst_5 = arith.constant 1.000000e+00 : f32
    %15 = vector.broadcast %cst_4 : f32 to vector<8x128xf32>
    %16 = arith.maximumf %15, %14 : vector<8x128xf32>
    %17 = vector.broadcast %cst_5 : f32 to vector<8x128xf32>
    %18 = arith.minimumf %17, %16 : vector<8x128xf32>
    %c0_6 = arith.constant 0 : index
    %c0_7 = arith.constant 0 : index
    %19 = vector.load %arg3[%c0_6, %c0_7] : memref<8x128xf32, #tpu.memory_space<vmem>>, vector<8x128xf32>
    tpu.vector_store %arg3[%c0_6, %c0_7], %18 {strides = array<i32>} : memref<8x128xf32, #tpu.memory_space<vmem>>, vector<8x128xf32>,
    return
  }
  func.func @transform_0(%arg0: i32) -> i32 {
    %c0_i32 = arith.constant 0 : i32
    %c0_i32_0 = arith.constant 0 : i32
    return %c0_i32 : i32
  }
  func.func @transform_1(%arg0: i32) -> (i32, i32) {
    %c0_i32 = arith.constant 0 : i32
    %c0_i32_0 = arith.constant 0 : i32
    return %arg0, %c0_i32 : i32, i32
  }
  func.func @transform_2(%arg0: i32) -> (i32, i32) {
    %c0_i32 = arith.constant 0 : i32
    %c0_i32_0 = arith.constant 0 : i32
    return %arg0, %c0_i32 : i32, i32
  }
}

</mosaic_0001>

<llo_original>
// kernel: _adjust_gamma_pair.2
$region0: #{_adjust_gamma_pair.2}
  #allocation0 [shape = 'u32[]', space=smem, size = 0x4, offset = 0x4, fixed_abs, tag = 'smem constant byte address 0x4 - core index']
  #allocation1 [shape = 'u32[144,128]{1,0:T(1,128)}', space=vmem, size = 0x12000, scoped, tag = 'internal scratch']
  %s0 = inlined_call_operand.vmem [shape: f32[2], index: 0, kind: input, shape index: {}]
  %s1 = inlined_call_operand.vmem [shape: f32[16,128], index: 1, kind: input, shape index: {}]
  %s2 = inlined_call_operand.vmem [shape: f32[16,128], index: 2, kind: output, shape index: {}]
  %s3 = sld [smem:[#allocation0]]
  $region45: #{_adjust_gamma_pair.2} parent=0
    _
  %s5 = ssub.s32 1, %s3
  %s6 = scalar_select 0, %s5, %s3
  $region1: #{_adjust_gamma_pair.2} parent=0
    #allocation2 [shape = 'u8[512]{0}', space=smem, size = 0x200, scoped, tag = 'input window, operand 0, single buffered']
    #allocation3 [shape = 's32[2]{0}', space=sflag, size = 0x8, scoped, tag = 'scoped memory for _adjust_gamma_pair.2']
    %7 = vsyncpa [#allocation3], 0
    loop: start=0, step=1, limit=4
    $region2: #{_adjust_gamma_pair.2} parent=1 // loop_pre_header
      _
    $region3: #{_adjust_gamma_pair.2} parent=1 // loop_header
      %s9 = sphi 0, %s13
      %p10 = scmp.ge.s32.totalorder %s9, 4
      %s17 = sphi 0, %s17
      %s19 = sphi 0, %s17
      %s20 = sphi 0, %s19
      %s34 = sphi 0, %s20
      %s40 = sphi 0, %s42
      %s43 = sphi 0, %s40
      %s44 = sphi 0, %s43
      %s60 = sphi 0, %s44
      %s66 = sphi 0, %s68
      %s69 = sphi 0, %s66
      %s70 = sphi 0, %s69
      %s86 = sphi 0, %s70
    $region4: #{_adjust_gamma_pair.2} parent=1 // loop_header_branch
      %12 = sbr.rel (%p10) target = $region8
    $region5: #{_adjust_gamma_pair.2} parent=1 // loop_body
      %s14 = ssub.s32 %s9, 1
      %s15 = ssub.s32 %s9, 2
      %s16 = sadd.s32 %s9, 1
      %s18 = sadd.s32 %s17, 1
      %p21 = scmp.eq.s32.totalorder %s9, 1
      %p22 = scmp.ne.s32.totalorder %s17, %s19
      %p23 = scmp.eq.s32.totalorder %s9, 0
      %p24 = por %p22, %p23
      %p25 = scmp.ne.s32.totalorder %s17, %s19
      %p26 = scmp.eq.s32.totalorder %s14, 1
      %p27 = por %p25, %p26
      %p28 = scmp.ne.s32.totalorder %s19, %s20
      %p29 = scmp.eq.s32.totalorder %s14, 0
      %p30 = por %p28, %p29
      %p31 = scmp.ne.s32.totalorder %s19, %s20
      %p32 = scmp.eq.s32.totalorder %s15, 1
      %p33 = por %p31, %p32
      %p35 = scmp.ne.s32.totalorder %s20, %s34
      %p36 = scmp.eq.s32.totalorder %s15, 0
      %p37 = por %p35, %p36
      %s38 = ssub.s32 %s9, %s16
      %p39 = scmp.eq.s32.totalorder %s38, 0
      %s41 = sadd.s32 %s40, 1
      %s42 = scalar_select %p39, %s40, %s41
      %p45 = pneg %p39
      %p46 = scmp.eq.s32.totalorder %s9, 1
      %p47 = por %p45, %p46
      %p48 = scmp.ne.s32.totalorder %s40, %s43
      %p49 = scmp.eq.s32.totalorder %s9, 0
      %p50 = por %p48, %p49
      %p51 = scmp.ne.s32.totalorder %s40, %s43
      %p52 = scmp.eq.s32.totalorder %s14, 1
      %p53 = por %p51, %p52
      %p54 = scmp.ne.s32.totalorder %s43, %s44
      %p55 = scmp.eq.s32.totalorder %s14, 0
      %p56 = por %p54, %p55
      %p57 = scmp.ne.s32.totalorder %s43, %s44
      %p58 = scmp.eq.s32.totalorder %s15, 1
      %p59 = por %p57, %p58
      %p61 = scmp.ne.s32.totalorder %s44, %s60
      %p62 = scmp.eq.s32.totalorder %s15, 0
      %p63 = por %p61, %p62
      %s64 = ssub.s32 %s9, %s16
      %p65 = scmp.eq.s32.totalorder %s64, 0
      %s67 = sadd.s32 %s66, 1
      %s68 = scalar_select %p65, %s66, %s67
      %p71 = pneg %p65
      %p72 = scmp.eq.s32.totalorder %s9, 1
      %p73 = por %p71, %p72
      %p74 = scmp.ne.s32.totalorder %s66, %s69
      %p75 = scmp.eq.s32.totalorder %s9, 0
      %p76 = por %p74, %p75
      %p77 = scmp.ne.s32.totalorder %s66, %s69
      %p78 = scmp.eq.s32.totalorder %s14, 1
      %p79 = por %p77, %p78
      %p80 = scmp.ne.s32.totalorder %s69, %s70
      %p81 = scmp.eq.s32.totalorder %s14, 0
      %p82 = por %p80, %p81
      %p83 = scmp.ne.s32.totalorder %s69, %s70
      %p84 = scmp.eq.s32.totalorder %s15, 1
      %p85 = por %p83, %p84
      %p87 = scmp.ne.s32.totalorder %s70, %s86
      %p88 = scmp.eq.s32.totalorder %s15, 0
      %p89 = por %p87, %p88
      %p90 = scmp.le.s32.totalorder 1, %s9
      %p91 = scmp.lt.s32.totalorder %s9, 3
      %p92 = pnand %p90, %p91
      %p93 = pneg %p92
      // Predicated region
      $region9: #{_adjust_gamma_pair.2} parent=5 // pred_check
        _
      $region10: #{_adjust_gamma_pair.2} parent=5 // pred_check_branch
        %95 = sbr.rel (%p92) target = $region12
      $region11: #{_adjust_gamma_pair.2} parent=5 // pred_region
        %s96 = ssub.s32 %s9, 1
        // Predicated region
        $region13: #{_adjust_gamma_pair.2} parent=11 // pred_check
          %p97 = pneg %p30
        $region14: #{_adjust_gamma_pair.2} parent=11 // pred_check_branch
          %99 = sbr.rel (%p97) target = $region16
        $region15: #{_adjust_gamma_pair.2} parent=11 // pred_region
          %s101 = ssub.s32 16, 16
          %102 = vsyncadd [#allocation3], %s101
          %s104 = sshll.u32 %s0, 4
          %s105 = int_to_ptr.vmem [resolvable:$true] %s104
          %107 = dma.vmem_to_smem %s105, 16, [#allocation2], [#allocation3]
        $region16: #{_adjust_gamma_pair.2} parent=11 // pred_fallthru
          _
      $region12: #{_adjust_gamma_pair.2} parent=5 // pred_fallthru
        _
      %p108 = scmp.lt.s32.totalorder %s9, 2
      // Predicated region
      $region17: #{_adjust_gamma_pair.2} parent=5 // pred_check
        %p109 = pneg %p108
      $region18: #{_adjust_gamma_pair.2} parent=5 // pred_check_branch
        %111 = sbr.rel (%p109) target = $region20
      $region19: #{_adjust_gamma_pair.2} parent=5 // pred_region
        // Predicated region
        $region21: #{_adjust_gamma_pair.2} parent=19 // pred_check
          %p112 = pneg %p50
        $region22: #{_adjust_gamma_pair.2} parent=19 // pred_check_branch
          %114 = sbr.rel (%p112) target = $region24
        $region23: #{_adjust_gamma_pair.2} parent=19 // pred_region
          %p115 = scmp.lt.s32.totalorder %s9, 1
          %s116 = scalar_select %p115, %s9, 1
          %s117 = smul.addr %s116, 8
          %s118 = scalar_lea.vmem %s1, %s117
        $region24: #{_adjust_gamma_pair.2} parent=19 // pred_fallthru
          _
      $region20: #{_adjust_gamma_pair.2} parent=5 // pred_fallthru
        _
      %p119 = scmp.le.s32.totalorder 1, %s9
      %p120 = scmp.lt.s32.totalorder %s9, 3
      %p121 = pnand %p119, %p120
      %p122 = pneg %p121
      // Predicated region
      $region25: #{_adjust_gamma_pair.2} parent=5 // pred_check
        _
      $region26: #{_adjust_gamma_pair.2} parent=5 // pred_check_branch
        %124 = sbr.rel (%p121) target = $region28
      $region27: #{_adjust_gamma_pair.2} parent=5 // pred_region
        %s125 = ssub.s32 %s9, 1
        // Predicated region
        $region29: #{_adjust_gamma_pair.2} parent=27 // pred_check
          %p126 = pneg %p30
        $region30: #{_adjust_gamma_pair.2} parent=27 // pred_check_branch
          %128 = sbr.rel (%p126) target = $region32
        $region31: #{_adjust_gamma_pair.2} parent=27 // pred_region
          %129 = dma.done [#allocation3], 16
        $region32: #{_adjust_gamma_pair.2} parent=27 // pred_fallthru
          _
        %130 = sfence
        %p131 = pneg %p30
        %p132 = pneg %p27
        %p133 = scmp.lt.s32.totalorder %s14, 1
        %s134 = scalar_select %p133, %s14, 1
        %s135 = smul.addr %s134, 8
        %s136 = scalar_lea.vmem %s1, %s135
        %p137 = pneg %p56
        %p138 = pneg %p53
        %p139 = pneg %p82
        %p140 = pneg %p79
        %p141 = scmp.lt.s32.totalorder %s14, 1
        %s142 = scalar_select %p141, %s14, 1
        %s143 = smul.addr %s142, 8
        %s144 = scalar_lea.vmem %s2, %s143
        %p145 = scmp.lt.s32.totalorder %s14, 1
        %s146 = scalar_select %p145, %s14, 1
        %s147 = smul.addr %s146, 8
        %s148 = scalar_lea.vmem %s1, %s147
        %p149 = scmp.lt.s32.totalorder %s14, 1
        %s150 = scalar_select %p149, %s14, 1
        %s151 = smul.addr %s150, 8
        %s152 = scalar_lea.vmem %s2, %s151
        %s153 = sld [smem:[#allocation2]]
        %s154 = sld [smem:[#allocation2 + $0x1]]
        %v155 = vld [vmem:[%s148] sm:$0xff]
        %v156 = vmax.f32 %v155, 1e-30
        %v157 = vlog2.pop %v156
        %v158 = vmul.f32 %v157, 0.6931472
        %v159 = vstv %s153
        %v160 = vmul.f32 %v159, %v158
        %v161 = vmul.f32 %v160, 1.442695
        %v162 = vpow.pop %v161
        %vm163 = vcmp.gt.f32.partialorder %v155, 0.0
        %v164 = vsel %vm163, %v162, 0.0
        %v165 = vstv %s154
        %v166 = vmul.f32 %v165, %v164
        %v167 = vmax.f32 %v166, 0.0
        %v168 = vmin.f32 %v167, 1.0
        %169 = vst [vmem:[%s152] sm:$0xff] %v168
        %p170 = scmp.lt.s32.totalorder %s14, 1
        %s171 = scalar_select %p170, %s14, 1
        %s172 = smul.addr %s171, 8
        %s173 = scalar_lea.vmem %s2, %s172
        // Predicated region
        $region33: #{_adjust_gamma_pair.2} parent=27 // pred_check
          %p174 = pneg %p79
        $region34: #{_adjust_gamma_pair.2} parent=27 // pred_check_branch
          %176 = sbr.rel (%p174) target = $region36
        $region35: #{_adjust_gamma_pair.2} parent=27 // pred_region
          _
        $region36: #{_adjust_gamma_pair.2} parent=27 // pred_fallthru
          _
      $region28: #{_adjust_gamma_pair.2} parent=5 // pred_fallthru
        _
      %p177 = scmp.le.s32.totalorder 2, %s9
      // Predicated region
      $region37: #{_adjust_gamma_pair.2} parent=5 // pred_check
        %p178 = pneg %p177
      $region38: #{_adjust_gamma_pair.2} parent=5 // pred_check_branch
        %180 = sbr.rel (%p178) target = $region40
      $region39: #{_adjust_gamma_pair.2} parent=5 // pred_region
        %s181 = ssub.s32 %s9, 2
        // Predicated region
        $region41: #{_adjust_gamma_pair.2} parent=39 // pred_check
          %p182 = pneg %p85
        $region42: #{_adjust_gamma_pair.2} parent=39 // pred_check_branch
          %184 = sbr.rel (%p182) target = $region44
        $region43: #{_adjust_gamma_pair.2} parent=39 // pred_region
          %p185 = scmp.lt.s32.totalorder %s15, 1
          %s186 = scalar_select %p185, %s15, 1
          %s187 = smul.addr %s186, 8
          %s188 = scalar_lea.vmem %s2, %s187
        $region44: #{_adjust_gamma_pair.2} parent=39 // pred_fallthru
          _
      $region40: #{_adjust_gamma_pair.2} parent=5 // pred_fallthru
        _
    $region6: #{_adjust_gamma_pair.2} parent=1 // loop_footer
      %s13 = sadd.s32 1, %s9
    $region7: #{_adjust_gamma_pair.2} parent=1 // loop_footer_branch
      %8 = sbr.rel target = $region3
    $region8: #{_adjust_gamma_pair.2} parent=1 // loop_exit
      _
    %189 = vsyncpa [#allocation3], 1
    %s190 = scalar_lea.sflag [#allocation3], 1
    %191 = vsyncpa %s190, 1

</llo_original>
